<compile_context>
chip_gen: v5e
topology: v5e:2x2
jax: 0.10.0
libtpu: 0.0.40
codegen_flags: <defaults>
</compile_context>

<pallas_src>
import functools

import jax
import jax.numpy as jnp
from jax.experimental import pallas as pl
from jax.experimental.pallas import tpu as pltpu


def _cdiv(a, b):
    return -(-a // b)


def _tpu_info():
    try:
        return pltpu.get_tpu_info()
    except Exception:
        return None


def _vmem_capacity_bytes():
    info = _tpu_info()
    if info is not None:
        cap = getattr(info, "vmem_capacity_bytes", None)
        if cap:
            return int(cap)
    return 64 << 20  # conservative: v7x per-core VMEM


def _detect_num_cores():
    """TensorCores per chip: 2 on v7x, 1 on v5e/v6e. Safe fallback: 1."""
    info = _tpu_info()
    if info is not None:
        for attr in ("num_cores", "core_count", "num_tensorcores",
                     "tensorcores_per_chip", "num_tensor_cores"):
            v = getattr(info, attr, None)
            if isinstance(v, int) and v > 0:
                return v
    return 1


def _loss_elems(xl, xr, y, margin, tie_margin):
    """Elementwise loss (same math as the kernel body / PyTorch module)."""
    xl = xl.astype(jnp.float32)
    xr = xr.astype(jnp.float32)
    y = y.astype(jnp.float32)
    diff = xl - xr
    bin_y = jnp.abs(y)
    tie_y = 1.0 - bin_y
    tie_loss = jnp.maximum((jnp.abs(diff) - tie_margin) * tie_y, 0.0)
    rank_loss = jnp.maximum(-y * diff + bin_y * margin, 0.0)
    return rank_loss + tie_loss


def _ranking_loss_kernel(xl_ref, xr_ref, y_ref, acc_ref, *,
                         margin, tie_margin, tiles_per_core, num_tiles,
                         needs_gate):
    j = pl.program_id(1)   # arbitrary (reduction) axis

    @pl.when(j == 0)
    def _init():
        acc_ref[...] = jnp.zeros_like(acc_ref)

    def _accumulate():
        xl = xl_ref[...].astype(jnp.float32)
        xr = xr_ref[...].astype(jnp.float32)
        y = y_ref[...].astype(jnp.float32)

        diff = xl - xr
        bin_y = jnp.abs(y)
        tie_y = 1.0 - bin_y
        tie_loss = jnp.maximum((jnp.abs(diff) - tie_margin) * tie_y, 0.0)
        rank_loss = jnp.maximum(-y * diff + bin_y * margin, 0.0)
        loss = rank_loss + tie_loss

        rows, cols = loss.shape
        # Lane-resident partial sums: sublane-group fold is pure vreg-wise
        # VPU adds (no per-step cross-lane reduce); the tiny final reduce
        # happens once in the JAX wrapper.
        acc_ref[...] += loss.reshape(rows // 8, 8, cols).sum(axis=0)

    if needs_gate:
        p = pl.program_id(0)
        t = p * tiles_per_core + j
        pl.when(t < num_tiles)(_accumulate)
    else:
        _accumulate()


def ranking_loss(x_left, x_right, y, *, margin=1.0, tie_margin=1.0,
                 block_rows=None, block_cols=128, num_cores=None):
    """Mean of margin-ranking + tie loss (matches the PyTorch RankingLoss)."""
    assert x_left.shape == x_right.shape == y.shape
    n = int(x_left.size)
    assert n > 0

    cols = int(block_cols)
    assert cols % 128 == 0

    vmem_cap = _vmem_capacity_bytes()
    if num_cores is None:
        num_cores = _detect_num_cores()
    if block_rows is None:
        # ~4 MiB per f32 input tile on v7x (64 MiB VMEM), ~8 MiB on v5e/v6e.
        per_tile_bytes = (8 << 20) if vmem_cap >= (96 << 20) else (4 << 20)
        block_rows = max(8, per_tile_bytes // (cols * 4))
    tile_rows = int(block_rows)
    assert tile_rows % 8 == 0
    tile_elems = tile_rows * cols

    flat_l = x_left.reshape(-1)
    flat_r = x_right.reshape(-1)
    flat_y = y.reshape(-1)

    if n % cols == 0:
        # Zero-copy 2-D view; the grid only visits whole row-blocks, the
        # partial last block (if any) goes to the fused jnp tail below.
        rows = n // cols
        num_tiles = rows // tile_rows
        n_bulk = num_tiles * tile_elems

        def _as2d(f):
            return f.reshape(rows, cols)
    else:
        # Lane-misaligned total size: hand the kernel only the whole-tile
        # prefix (static slice), everything else is the jnp tail.
        num_tiles = n // tile_elems
        n_bulk = num_tiles * tile_elems

        def _as2d(f):
            return f[:n_bulk].reshape(num_tiles * tile_rows, cols)

    bulk_sum = jnp.float32(0.0)
    if num_tiles > 0:
        xl2, xr2, y2 = _as2d(flat_l), _as2d(flat_r), _as2d(flat_y)

        ncores = int(num_cores) if num_tiles >= int(num_cores) else 1
        ncores = max(1, ncores)
        tiles_per_core = _cdiv(num_tiles, ncores)
        needs_gate = (ncores * tiles_per_core != num_tiles)

        if needs_gate:
            def in_index(p, j):
                t = p * tiles_per_core + j
                return (jnp.minimum(t, num_tiles - 1), 0)
        else:
            def in_index(p, j):
                return (p * tiles_per_core + j, 0)

        in_spec = pl.BlockSpec((tile_rows, cols), in_index)
        out_spec = pl.BlockSpec((8, cols), lambda p, j: (p, 0))

        itemsizes = [jnp.dtype(a.dtype).itemsize for a in (xl2, xr2, y2)]
        in_tile_bytes = sum(tile_rows * cols * s for s in itemsizes)
        max_tile_bytes = tile_rows * cols * max(itemsizes)
        # double-buffered inputs + compiler-temp slack that scales with tile.
        vmem_limit = 2 * in_tile_bytes + 2 * max_tile_bytes + (2 << 20)
        vmem_limit = max(vmem_limit, 32 << 20)
        vmem_limit = min(vmem_limit, (vmem_cap * 3) // 4)
        vmem_limit = max(vmem_limit, 16 << 20)

        kernel = functools.partial(
            _ranking_loss_kernel,
            margin=float(margin), tie_margin=float(tie_margin),
            tiles_per_core=tiles_per_core, num_tiles=num_tiles,
            needs_gate=needs_gate)

        partials = pl.pallas_call(
            kernel,
            out_shape=jax.ShapeDtypeStruct((ncores * 8, cols), jnp.float32),
            grid_spec=pltpu.PrefetchScalarGridSpec(
                num_scalar_prefetch=0,
                grid=(ncores, tiles_per_core),
                in_specs=[in_spec, in_spec, in_spec],
                out_specs=out_spec,
            ),
            compiler_params=pltpu.CompilerParams(
                dimension_semantics=("parallel", "arbitrary"),
                vmem_limit_bytes=int(vmem_limit),
            ),
        )(xl2, xr2, y2)
        bulk_sum = jnp.sum(partials)

    if n_bulk < n:
        # Fused slice+elementwise+reduce: reads only the tail bytes.
        tail_sum = jnp.sum(_loss_elems(flat_l[n_bulk:], flat_r[n_bulk:],
                                       flat_y[n_bulk:], float(margin),
                                       float(tie_margin)))
    else:
        tail_sum = jnp.float32(0.0)

    return (bulk_sum + tail_sum) / jnp.float32(n)


def _ranking_loss_ref(x_left, x_right, y, margin=1.0, tie_margin=1.0):
    return jnp.mean(_loss_elems(x_left, x_right, y, margin, tie_margin))


if __name__ == "__main__":
    key = jax.random.PRNGKey(0)

    def make_inputs(k, shape):
        k1, k2, k3 = jax.random.split(k, 3)
        xl = jax.random.normal(k1, shape, dtype=jnp.float32)
        xr = jax.random.normal(k2, shape, dtype=jnp.float32)
        # y in {-1, 0, +1}: -1/+1 ranking labels, 0 means a tie.
        yy = jax.random.randint(k3, shape, -1, 2).astype(jnp.float32)
        return xl, xr, yy

    cases = [
        # (shape, kwargs) — small shapes; small blocks exercise the kernel.
        ((16, 128), dict(block_rows=8, block_cols=128)),   # zero-copy, 2 tiles
        ((7, 33), dict(block_rows=8, block_cols=128)),     # tiny -> jnp tail only
        ((33, 130), dict(block_rows=8, block_cols=128)),   # sliced bulk + tail
        ((24, 128), dict(block_rows=8, block_cols=128,     # 2 cores, 3 tiles ->
                         num_cores=2)),                    # clamped/gated step
        ((16, 128), {}),                                   # default (large-tile) config
    ]

    keys = jax.random.split(key, len(cases))
    for k, (shape, kw) in zip(keys, cases):
        xl, xr, yy = make_inputs(k, shape)
        out = jax.block_until_ready(
            ranking_loss(xl, xr, yy, margin=1.0, tie_margin=1.0, **kw))
        ref = _ranking_loss_ref(xl, xr, yy)
        assert jnp.allclose(out, ref, rtol=1e-5, atol=1e-6), (shape, out, ref)

    print("KERNEL_OK")
</pallas_src>

<mosaic_0001>
module attributes {stable_mosaic.version = 11 : i64} {
  func.func @_ranking_loss_kernel(%arg0: i32, %arg1: i32, %arg2: memref<8x128xf32, #tpu.memory_space<vmem>>, %arg3: memref<8x128xf32, #tpu.memory_space<vmem>>, %arg4: memref<8x128xf32, #tpu.memory_space<vmem>>, %arg5: memref<8x128xf32, #tpu.memory_space<vmem>>) attributes {dimension_semantics = [#tpu.dimension_semantics<parallel>, #tpu.dimension_semantics<arbitrary>], iteration_bounds = array<i64: 1, 2>, scalar_prefetch = 0 : i64, scratch_operands = 0 : i64, tpu.core_type = #tpu.core_type<tc>, window_params = [{transform_indices = @transform_0, window_bounds = array<i64: 8, 128>}, {transform_indices = @transform_1, window_bounds = array<i64: 8, 128>}, {transform_indices = @transform_2, window_bounds = array<i64: 8, 128>}, {transform_indices = @transform_3, window_bounds = array<i64: 8, 128>}]} {
    %c0_i32 = arith.constant 0 : i32
    %0 = arith.cmpi eq, %arg1, %c0_i32 : i32
    %1 = arith.extui %0 : i1 to i32
    %c0_i32_0 = arith.constant 0 : i32
    %2 = arith.cmpi ne, %1, %c0_i32_0 : i32
    scf.if %2 {
      %cst_16 = arith.constant 0.000000e+00 : f32
      %30 = vector.broadcast %cst_16 : f32 to vector<8x128xf32>
      %c0_17 = arith.constant 0 : index
      %c0_18 = arith.constant 0 : index
      %31 = vector.load %arg5[%c0_17, %c0_18] : memref<8x128xf32, #tpu.memory_space<vmem>>, vector<8x128xf32>
      tpu.vector_store %arg5[%c0_17, %c0_18], %30 {strides = array<i32>} : memref<8x128xf32, #tpu.memory_space<vmem>>, vector<8x128xf32>,
    } else {
    }
    %c0 = arith.constant 0 : index
    %c0_1 = arith.constant 0 : index
    %3 = vector.load %arg2[%c0, %c0_1] : memref<8x128xf32, #tpu.memory_space<vmem>>, vector<8x128xf32>
    %c0_2 = arith.constant 0 : index
    %c0_3 = arith.constant 0 : index
    %4 = vector.load %arg3[%c0_2, %c0_3] : memref<8x128xf32, #tpu.memory_space<vmem>>, vector<8x128xf32>
    %c0_4 = arith.constant 0 : index
    %c0_5 = arith.constant 0 : index
    %5 = vector.load %arg4[%c0_4, %c0_5] : memref<8x128xf32, #tpu.memory_space<vmem>>, vector<8x128xf32>
    %6 = arith.subf %3, %4 : vector<8x128xf32>
    %7 = math.absf %5 : vector<8x128xf32>
    %cst = arith.constant 1.000000e+00 : f32
    %8 = vector.broadcast %cst : f32 to vector<8x128xf32>
    %9 = arith.subf %8, %7 : vector<8x128xf32>
    %10 = math.absf %6 : vector<8x128xf32>
    %cst_6 = arith.constant 1.000000e+00 : f32
    %11 = vector.broadcast %cst_6 : f32 to vector<8x128xf32>
    %12 = arith.subf %10, %11 : vector<8x128xf32>
    %13 = arith.mulf %12, %9 : vector<8x128xf32>
    %cst_7 = arith.constant 0.000000e+00 : f32
    %14 = vector.broadcast %cst_7 : f32 to vector<8x128xf32>
    %15 = arith.maximumf %13, %14 : vector<8x128xf32>
    %cst_8 = arith.constant 0.000000e+00 : f32
    %16 = vector.broadcast %cst_8 : f32 to vector<8x128xf32>
    %17 = arith.subf %16, %5 : vector<8x128xf32>
    %18 = arith.mulf %17, %6 : vector<8x128xf32>
    %cst_9 = arith.constant 1.000000e+00 : f32
    %19 = vector.broadcast %cst_9 : f32 to vector<8x128xf32>
    %20 = arith.mulf %7, %19 : vector<8x128xf32>
    %21 = arith.addf %18, %20 : vector<8x128xf32>
    %cst_10 = arith.constant 0.000000e+00 : f32
    %22 = vector.broadcast %cst_10 : f32 to vector<8x128xf32>
    %23 = arith.maximumf %21, %22 : vector<8x128xf32>
    %24 = arith.addf %23, %15 : vector<8x128xf32>
    %c0_11 = arith.constant 0 : index
    %c0_12 = arith.constant 0 : index
    %25 = vector.load %arg5[%c0_11, %c0_12] : memref<8x128xf32, #tpu.memory_space<vmem>>, vector<8x128xf32>
    %26 = vector.shape_cast %24 : vector<8x128xf32> to vector<1x8x128xf32>
    %cst_13 = arith.constant dense<0.000000e+00> : vector<8x128xf32>
    %27 = vector.multi_reduction <add>, %26, %cst_13 [0] : vector<1x8x128xf32> to vector<8x128xf32>
    %28 = arith.addf %25, %27 : vector<8x128xf32>
    %c0_14 = arith.constant 0 : index
    %c0_15 = arith.constant 0 : index
    %29 = vector.load %arg5[%c0_14, %c0_15] : memref<8x128xf32, #tpu.memory_space<vmem>>, vector<8x128xf32>
    tpu.vector_store %arg5[%c0_14, %c0_15], %28 {strides = array<i32>} : memref<8x128xf32, #tpu.memory_space<vmem>>, vector<8x128xf32>,
    return
  }
  func.func @transform_0(%arg0: i32, %arg1: i32) -> (i32, i32) {
    %c2_i32 = arith.constant 2 : i32
    %0 = arith.muli %arg0, %c2_i32 : i32
    %1 = arith.addi %0, %arg1 : i32
    %c0_i32 = arith.constant 0 : i32
    %c0_i32_0 = arith.constant 0 : i32
    return %1, %c0_i32 : i32, i32
  }
  func.func @transform_1(%arg0: i32, %arg1: i32) -> (i32, i32) {
    %c2_i32 = arith.constant 2 : i32
    %0 = arith.muli %arg0, %c2_i32 : i32
    %1 = arith.addi %0, %arg1 : i32
    %c0_i32 = arith.constant 0 : i32
    %c0_i32_0 = arith.constant 0 : i32
    return %1, %c0_i32 : i32, i32
  }
  func.func @transform_2(%arg0: i32, %arg1: i32) -> (i32, i32) {
    %c2_i32 = arith.constant 2 : i32
    %0 = arith.muli %arg0, %c2_i32 : i32
    %1 = arith.addi %0, %arg1 : i32
    %c0_i32 = arith.constant 0 : i32
    %c0_i32_0 = arith.constant 0 : i32
    return %1, %c0_i32 : i32, i32
  }
  func.func @transform_3(%arg0: i32, %arg1: i32) -> (i32, i32) {
    %c0_i32 = arith.constant 0 : i32
    %c0_i32_0 = arith.constant 0 : i32
    return %arg0, %c0_i32 : i32, i32
  }
}

</mosaic_0001>

<llo_original>
// kernel: tpu_custom_call.1
$region0: #{tpu_custom_call.1}
  #allocation0 [shape = 'u32[]', space=smem, size = 0x4, offset = 0x4, fixed_abs, tag = 'smem constant byte address 0x4 - core index']
  #allocation1 [shape = 'u32[72,128]{1,0:T(1,128)}', space=vmem, size = 0x9000, scoped, tag = 'internal scratch']
  %s0 = inlined_call_operand.hbm [shape: f32[16,128], index: 0, kind: input, shape index: {}]
  %s1 = inlined_call_operand.hbm [shape: f32[16,128], index: 1, kind: input, shape index: {}]
  %s2 = inlined_call_operand.hbm [shape: f32[16,128], index: 2, kind: input, shape index: {}]
  %s3 = inlined_call_operand.hbm [shape: f32[8,128], index: 3, kind: output, shape index: {}]
  %s4 = sld [smem:[#allocation0]]
  $region61: #{tpu_custom_call.1} parent=0
    _
  %s6 = ssub.s32 1, %s4
  %s7 = scalar_select 0, %s6, %s4
  $region1: #{tpu_custom_call.1} parent=0
    #allocation2 [shape = 'u8[8192]{0}', space=vmem, size = 0x2000, scoped, tag = 'input window, operand 0']
    #allocation3 [shape = 's32[2]{0}', space=sflag, size = 0x8, scoped, tag = 'scoped memory for tpu_custom_call.1']
    #allocation4 [shape = 's32[2]{0}', space=sflag, size = 0x8, scoped, tag = 'scoped memory for tpu_custom_call.1']
    #allocation5 [shape = 'u8[8192]{0}', space=vmem, size = 0x2000, scoped, tag = 'input window, operand 1']
    #allocation6 [shape = 's32[2]{0}', space=sflag, size = 0x8, scoped, tag = 'scoped memory for tpu_custom_call.1']
    #allocation7 [shape = 'u8[8192]{0}', space=vmem, size = 0x2000, scoped, tag = 'input window, operand 2']
    #allocation8 [shape = 'u8[4096]{0}', space=vmem, size = 0x1000, scoped, tag = 'output window, operand 0, single buffered']
    %8 = vsyncpa [#allocation3], 0
    %s9 = scalar_lea.sflag [#allocation3], 1
    %10 = vsyncpa %s9, 0
    %11 = vsyncpa [#allocation6], 0
    %s12 = scalar_lea.sflag [#allocation6], 1
    %13 = vsyncpa %s12, 0
    %14 = vsyncpa [#allocation4], 0
    loop: start=0, step=1, limit=4
    $region2: #{tpu_custom_call.1} parent=1 // loop_pre_header
      _
    $region3: #{tpu_custom_call.1} parent=1 // loop_header
      %s16 = sphi 0, %s20
      %p17 = scmp.ge.s32.totalorder %s16, 4
      %s23 = sphi 0, %s35
      %s24 = sphi 0, %s31
      %s25 = sphi 0, %s23
      %s26 = sphi 0, %s24
      %s27 = sphi 0, %s25
      %s28 = sphi 0, %s26
      %s42 = sphi 0, %s44
      %s45 = sphi 0, %s42
      %s46 = sphi 0, %s45
      %s62 = sphi 0, %s46
      %s72 = sphi 0, %s74
      %s75 = sphi 0, %s72
      %s76 = sphi 0, %s75
      %s92 = sphi 0, %s76
      %s102 = sphi 0, %s104
      %s105 = sphi 0, %s102
      %s106 = sphi 0, %s105
      %s122 = sphi 0, %s106
      %s128 = sphi 0, %s130
      %s131 = sphi 0, %s128
      %s132 = sphi 0, %s131
      %s148 = sphi 0, %s132
    $region4: #{tpu_custom_call.1} parent=1 // loop_header_branch
      %19 = sbr.rel (%p17) target = $region8
    $region5: #{tpu_custom_call.1} parent=1 // loop_body
      %s21 = ssub.s32 %s16, 1
      %s22 = ssub.s32 %s16, 2
      %s29 = sadd.s32 1, %s24
      %p30 = scmp.ge.s32.totalorder %s29, 2
      %s31 = scalar_select %p30, 0, %s29
      %s32 = sadd.s32 1, %s23
      %s33 = scalar_select %p30, %s32, %s23
      %p34 = scmp.ge.s32.totalorder %s33, 1
      %s35 = scalar_select %p34, 0, %s33
      %s36 = smul.u32 %s23, 2
      %s37 = sadd.s32 %s36, %s24
      %s38 = smul.u32 %s35, 2
      %s39 = sadd.s32 %s38, %s31
      %s40 = ssub.s32 %s37, %s39
      %p41 = scmp.eq.s32.totalorder %s40, 0
      %s43 = sadd.s32 %s42, 1
      %s44 = scalar_select %p41, %s42, %s43
      %p47 = pneg %p41
      %p48 = scmp.eq.s32.totalorder %s16, 1
      %p49 = por %p47, %p48
      %p50 = scmp.ne.s32.totalorder %s42, %s45
      %p51 = scmp.eq.s32.totalorder %s16, 0
      %p52 = por %p50, %p51
      %p53 = scmp.ne.s32.totalorder %s42, %s45
      %p54 = scmp.eq.s32.totalorder %s21, 1
      %p55 = por %p53, %p54
      %p56 = scmp.ne.s32.totalorder %s45, %s46
      %p57 = scmp.eq.s32.totalorder %s21, 0
      %p58 = por %p56, %p57
      %p59 = scmp.ne.s32.totalorder %s45, %s46
      %p60 = scmp.eq.s32.totalorder %s22, 1
      %p61 = por %p59, %p60
      %p63 = scmp.ne.s32.totalorder %s46, %s62
      %p64 = scmp.eq.s32.totalorder %s22, 0
      %p65 = por %p63, %p64
      %s66 = smul.u32 %s23, 2
      %s67 = sadd.s32 %s66, %s24
      %s68 = smul.u32 %s35, 2
      %s69 = sadd.s32 %s68, %s31
      %s70 = ssub.s32 %s67, %s69
      %p71 = scmp.eq.s32.totalorder %s70, 0
      %s73 = sadd.s32 %s72, 1
      %s74 = scalar_select %p71, %s72, %s73
      %p77 = pneg %p71
      %p78 = scmp.eq.s32.totalorder %s16, 1
      %p79 = por %p77, %p78
      %p80 = scmp.ne.s32.totalorder %s72, %s75
      %p81 = scmp.eq.s32.totalorder %s16, 0
      %p82 = por %p80, %p81
      %p83 = scmp.ne.s32.totalorder %s72, %s75
      %p84 = scmp.eq.s32.totalorder %s21, 1
      %p85 = por %p83, %p84
      %p86 = scmp.ne.s32.totalorder %s75, %s76
      %p87 = scmp.eq.s32.totalorder %s21, 0
      %p88 = por %p86, %p87
      %p89 = scmp.ne.s32.totalorder %s75, %s76
      %p90 = scmp.eq.s32.totalorder %s22, 1
      %p91 = por %p89, %p90
      %p93 = scmp.ne.s32.totalorder %s76, %s92
      %p94 = scmp.eq.s32.totalorder %s22, 0
      %p95 = por %p93, %p94
      %s96 = smul.u32 %s23, 2
      %s97 = sadd.s32 %s96, %s24
      %s98 = smul.u32 %s35, 2
      %s99 = sadd.s32 %s98, %s31
      %s100 = ssub.s32 %s97, %s99
      %p101 = scmp.eq.s32.totalorder %s100, 0
      %s103 = sadd.s32 %s102, 1
      %s104 = scalar_select %p101, %s102, %s103
      %p107 = pneg %p101
      %p108 = scmp.eq.s32.totalorder %s16, 1
      %p109 = por %p107, %p108
      %p110 = scmp.ne.s32.totalorder %s102, %s105
      %p111 = scmp.eq.s32.totalorder %s16, 0
      %p112 = por %p110, %p111
      %p113 = scmp.ne.s32.totalorder %s102, %s105
      %p114 = scmp.eq.s32.totalorder %s21, 1
      %p115 = por %p113, %p114
      %p116 = scmp.ne.s32.totalorder %s105, %s106
      %p117 = scmp.eq.s32.totalorder %s21, 0
      %p118 = por %p116, %p117
      %p119 = scmp.ne.s32.totalorder %s105, %s106
      %p120 = scmp.eq.s32.totalorder %s22, 1
      %p121 = por %p119, %p120
      %p123 = scmp.ne.s32.totalorder %s106, %s122
      %p124 = scmp.eq.s32.totalorder %s22, 0
      %p125 = por %p123, %p124
      %s126 = ssub.s32 %s23, %s35
      %p127 = scmp.eq.s32.totalorder %s126, 0
      %s129 = sadd.s32 %s128, 1
      %s130 = scalar_select %p127, %s128, %s129
      %p133 = pneg %p127
      %p134 = scmp.eq.s32.totalorder %s16, 1
      %p135 = por %p133, %p134
      %p136 = scmp.ne.s32.totalorder %s128, %s131
      %p137 = scmp.eq.s32.totalorder %s16, 0
      %p138 = por %p136, %p137
      %p139 = scmp.ne.s32.totalorder %s128, %s131
      %p140 = scmp.eq.s32.totalorder %s21, 1
      %p141 = por %p139, %p140
      %p142 = scmp.ne.s32.totalorder %s131, %s132
      %p143 = scmp.eq.s32.totalorder %s21, 0
      %p144 = por %p142, %p143
      %p145 = scmp.ne.s32.totalorder %s131, %s132
      %p146 = scmp.eq.s32.totalorder %s22, 1
      %p147 = por %p145, %p146
      %p149 = scmp.ne.s32.totalorder %s132, %s148
      %p150 = scmp.eq.s32.totalorder %s22, 0
      %p151 = por %p149, %p150
      %p152 = scmp.le.s32.totalorder 1, %s16
      %p153 = scmp.lt.s32.totalorder %s16, 3
      %p154 = pnand %p152, %p153
      %p155 = pneg %p154
      // Predicated region
      $region9: #{tpu_custom_call.1} parent=5 // pred_check
        _
      $region10: #{tpu_custom_call.1} parent=5 // pred_check_branch
        %157 = sbr.rel (%p154) target = $region12
      $region11: #{tpu_custom_call.1} parent=5 // pred_region
        %s158 = ssub.s32 %s16, 1
      $region12: #{tpu_custom_call.1} parent=5 // pred_fallthru
        _
      %p159 = scmp.lt.s32.totalorder %s16, 2
      // Predicated region
      $region13: #{tpu_custom_call.1} parent=5 // pred_check
        %p160 = pneg %p159
      $region14: #{tpu_custom_call.1} parent=5 // pred_check_branch
        %162 = sbr.rel (%p160) target = $region16
      $region15: #{tpu_custom_call.1} parent=5 // pred_region
        // Predicated region
        $region17: #{tpu_custom_call.1} parent=15 // pred_check
          %p163 = pneg %p52
        $region18: #{tpu_custom_call.1} parent=15 // pred_check_branch
          %165 = sbr.rel (%p163) target = $region20
        $region19: #{tpu_custom_call.1} parent=15 // pred_region
          %s166 = sand.u32 %s42, 1
          %s167 = scalar_lea.sflag [#allocation3], %s166
          %s168 = sand.u32 %s42, 1
          %s169 = smul.addr %s168, 8
          %s170 = scalar_lea.vmem [#allocation2], %s169
          %s171 = smul.u32 %s23, 2
          %s172 = sadd.s32 %s171, %s24
          %174 = vsyncadd %s167, 0
          %s175 = smul.addr %s172, 8
          %s176 = scalar_lea.hbm %s0, %s175
          %s178 = sshll.u32 %s176, 4
          %s179 = int_to_ptr.hbm [resolvable:$true] %s178
          %s180 = sshll.u32 %s170, 4
          %s181 = int_to_ptr.vmem [resolvable:$true] %s180
          %183 = dma.hbm_to_vmem [thread:$0]  %s179, 128, %s181, %s167
        $region20: #{tpu_custom_call.1} parent=15 // pred_fallthru
          _
        // Predicated region
        $region21: #{tpu_custom_call.1} parent=15 // pred_check
          %p184 = pneg %p82
        $region22: #{tpu_custom_call.1} parent=15 // pred_check_branch
          %186 = sbr.rel (%p184) target = $region24
        $region23: #{tpu_custom_call.1} parent=15 // pred_region
          %s187 = sand.u32 %s16, 1
          %s188 = scalar_lea.sflag [#allocation6], %s187
          %s189 = sand.u32 %s72, 1
          %s190 = smul.addr %s189, 8
          %s191 = scalar_lea.vmem [#allocation5], %s190
          %s192 = smul.u32 %s23, 2
          %s193 = sadd.s32 %s192, %s24
          %195 = vsyncadd %s188, 0
          %s196 = smul.addr %s193, 8
          %s197 = scalar_lea.hbm %s1, %s196
          %s199 = sshll.u32 %s197, 4
          %s200 = int_to_ptr.hbm [resolvable:$true] %s199
          %s201 = sshll.u32 %s191, 4
          %s202 = int_to_ptr.vmem [resolvable:$true] %s201
          %204 = dma.hbm_to_vmem [thread:$0]  %s200, 128, %s202, %s188
        $region24: #{tpu_custom_call.1} parent=15 // pred_fallthru
          _
        // Predicated region
        $region25: #{tpu_custom_call.1} parent=15 // pred_check
          %p205 = pneg %p112
        $region26: #{tpu_custom_call.1} parent=15 // pred_check_branch
          %207 = sbr.rel (%p205) target = $region28
        $region27: #{tpu_custom_call.1} parent=15 // pred_region
          %s208 = sand.u32 %s16, 1
          %s209 = scalar_lea.sflag [#allocation6], %s208
          %s210 = sand.u32 %s102, 1
          %s211 = smul.addr %s210, 8
          %s212 = scalar_lea.vmem [#allocation7], %s211
          %s213 = smul.u32 %s23, 2
          %s214 = sadd.s32 %s213, %s24
          %216 = vsyncadd %s209, 0
          %s217 = smul.addr %s214, 8
          %s218 = scalar_lea.hbm %s2, %s217
          %s220 = sshll.u32 %s218, 4
          %s221 = int_to_ptr.hbm [resolvable:$true] %s220
          %s222 = sshll.u32 %s212, 4
          %s223 = int_to_ptr.vmem [resolvable:$true] %s222
          %225 = dma.hbm_to_vmem [thread:$0]  %s221, 128, %s223, %s209
        $region28: #{tpu_custom_call.1} parent=15 // pred_fallthru
          _
      $region16: #{tpu_custom_call.1} parent=5 // pred_fallthru
        _
      %p226 = scmp.le.s32.totalorder 1, %s16
      %p227 = scmp.lt.s32.totalorder %s16, 3
      %p228 = pnand %p226, %p227
      %p229 = pneg %p228
      // Predicated region
      $region29: #{tpu_custom_call.1} parent=5 // pred_check
        _
      $region30: #{tpu_custom_call.1} parent=5 // pred_check_branch
        %231 = sbr.rel (%p228) target = $region32
      $region31: #{tpu_custom_call.1} parent=5 // pred_region
        %s232 = ssub.s32 %s16, 1
        %s233 = sand.u32 %s45, 1
        %s234 = scalar_lea.sflag [#allocation3], %s233
        %s235 = sand.u32 %s45, 1
        %s236 = smul.addr %s235, 8
        %s237 = scalar_lea.vmem [#allocation2], %s236
        // Predicated region
        $region33: #{tpu_custom_call.1} parent=31 // pred_check
          %p238 = pneg %p58
        $region34: #{tpu_custom_call.1} parent=31 // pred_check_branch
          %240 = sbr.rel (%p238) target = $region36
        $region35: #{tpu_custom_call.1} parent=31 // pred_region
          %242 = dma.done %s234, 128
        $region36: #{tpu_custom_call.1} parent=31 // pred_fallthru
          _
        %s243 = sand.u32 %s21, 1
        %s244 = scalar_lea.sflag [#allocation6], %s243
        %s245 = sand.u32 %s75, 1
        %s246 = smul.addr %s245, 8
        %s247 = scalar_lea.vmem [#allocation5], %s246
        // Predicated region
        $region37: #{tpu_custom_call.1} parent=31 // pred_check
          %p248 = pneg %p88
        $region38: #{tpu_custom_call.1} parent=31 // pred_check_branch
          %250 = sbr.rel (%p248) target = $region40
        $region39: #{tpu_custom_call.1} parent=31 // pred_region
          %252 = dma.done %s244, 128
        $region40: #{tpu_custom_call.1} parent=31 // pred_fallthru
          _
        %s253 = sand.u32 %s21, 1
        %s254 = scalar_lea.sflag [#allocation6], %s253
        %s255 = sand.u32 %s105, 1
        %s256 = smul.addr %s255, 8
        %s257 = scalar_lea.vmem [#allocation7], %s256
        // Predicated region
        $region41: #{tpu_custom_call.1} parent=31 // pred_check
          %p258 = pneg %p118
        $region42: #{tpu_custom_call.1} parent=31 // pred_check_branch
          %260 = sbr.rel (%p258) target = $region44
        $region43: #{tpu_custom_call.1} parent=31 // pred_region
          %262 = dma.done %s254, 128
        $region44: #{tpu_custom_call.1} parent=31 // pred_fallthru
          _
        %s263 = sand.u32 %s45, 1
        %s264 = scalar_lea.sflag [#allocation3], %s263
        %s265 = sand.u32 %s45, 1
        %s266 = smul.addr %s265, 8
        %s267 = scalar_lea.vmem [#allocation2], %s266
        %p268 = pneg %p58
        %p269 = pneg %p55
        %s270 = sand.u32 %s21, 1
        %s271 = scalar_lea.sflag [#allocation6], %s270
        %s272 = sand.u32 %s75, 1
        %s273 = smul.addr %s272, 8
        %s274 = scalar_lea.vmem [#allocation5], %s273
        %p275 = pneg %p88
        %p276 = pneg %p85
        %s277 = sand.u32 %s21, 1
        %s278 = scalar_lea.sflag [#allocation6], %s277
        %s279 = sand.u32 %s105, 1
        %s280 = smul.addr %s279, 8
        %s281 = scalar_lea.vmem [#allocation7], %s280
        %p282 = pneg %p118
        %p283 = pneg %p115
        %p284 = pneg %p144
        %p285 = pneg %p141
        %s286 = smul.u32 %s25, 2
        %s287 = sadd.s32 %s286, %s26
        %s288 = smul.u32 %s25, 2
        %s289 = sadd.s32 %s288, %s26
        %s290 = smul.u32 %s25, 2
        %s291 = sadd.s32 %s290, %s26
        %p292 = scmp.eq.s32.totalorder %s26, 0
        // Predicated region
        $region45: #{tpu_custom_call.1} parent=31 // pred_check
          %p293 = pneg %p292
        $region46: #{tpu_custom_call.1} parent=31 // pred_check_branch
          %295 = sbr.rel (%p293) target = $region48
        $region47: #{tpu_custom_call.1} parent=31 // pred_region
          %296 = vst [vmem:[#allocation8] sm:$0xff] 0.0
        $region48: #{tpu_custom_call.1} parent=31 // pred_fallthru
          _
        %v297 = vld [vmem:[%s237] sm:$0xff]
        %v298 = vld [vmem:[%s247] sm:$0xff]
        %v299 = vld [vmem:[%s257] sm:$0xff]
        %v300 = vsub.f32 %v297, %v298
        %v301 = vand.u32 2147483647, %v299
        %v302 = vsub.f32 1.0, %v301
        %v303 = vand.u32 2147483647, %v300
        %v304 = vsub.f32 %v303, 1.0
        %v305 = vmul.f32 %v304, %v302
        %v306 = vmax.f32 %v305, 0.0
        %v307 = vsub.f32 0.0, %v299
        %v308 = vmul.f32 %v307, %v300
        %v309 = vadd.f32 %v308, %v301
        %v310 = vmax.f32 %v309, 0.0
        %v311 = vadd.f32 %v310, %v306
        %v312 = vld [vmem:[#allocation8] sm:$0xff]
        %v313 = vadd.f32 %v311, 0.0
        %v314 = vadd.f32 %v312, %v313
        %315 = vst [vmem:[#allocation8] sm:$0xff] %v314
        // Predicated region
        $region49: #{tpu_custom_call.1} parent=31 // pred_check
          %p316 = pneg %p141
        $region50: #{tpu_custom_call.1} parent=31 // pred_check_branch
          %318 = sbr.rel (%p316) target = $region52
        $region51: #{tpu_custom_call.1} parent=31 // pred_region
          %320 = vsyncadd [#allocation4], 0
          %s321 = smul.addr %s25, 8
          %s322 = scalar_lea.hbm %s3, %s321
          %s324 = sshll.u32 [#allocation8], 4
          %s325 = int_to_ptr.vmem [resolvable:$true] %s324
          %s326 = sshll.u32 %s322, 4
          %s327 = int_to_ptr.hbm [resolvable:$true] %s326
          %329 = dma.vmem_to_hbm [thread:$0]  %s325, 128, %s327, [#allocation4]
        $region52: #{tpu_custom_call.1} parent=31 // pred_fallthru
          _
        // Predicated region
        $region53: #{tpu_custom_call.1} parent=31 // pred_check
          %p330 = pneg %p141
        $region54: #{tpu_custom_call.1} parent=31 // pred_check_branch
          %332 = sbr.rel (%p330) target = $region56
        $region55: #{tpu_custom_call.1} parent=31 // pred_region
          %334 = dma.done [#allocation4], 128
        $region56: #{tpu_custom_call.1} parent=31 // pred_fallthru
          _
      $region32: #{tpu_custom_call.1} parent=5 // pred_fallthru
        _
      %p335 = scmp.le.s32.totalorder 2, %s16
      // Predicated region
      $region57: #{tpu_custom_call.1} parent=5 // pred_check
        %p336 = pneg %p335
      $region58: #{tpu_custom_call.1} parent=5 // pred_check_branch
        %338 = sbr.rel (%p336) target = $region60
      $region59: #{tpu_custom_call.1} parent=5 // pred_region
        %s339 = ssub.s32 %s16, 2
      $region60: #{tpu_custom_call.1} parent=5 // pred_fallthru
        _
    $region6: #{tpu_custom_call.1} parent=1 // loop_footer
      %s20 = sadd.s32 1, %s16
    $region7: #{tpu_custom_call.1} parent=1 // loop_footer_branch
      %15 = sbr.rel target = $region3
    $region8: #{tpu_custom_call.1} parent=1 // loop_exit
      _
    %340 = vsyncpa [#allocation3], 1
    %s341 = scalar_lea.sflag [#allocation3], 1
    %342 = vsyncpa %s341, 1
    %343 = vsyncpa [#allocation6], 1
    %s344 = scalar_lea.sflag [#allocation6], 1
    %345 = vsyncpa %s344, 1
    %346 = vsyncpa [#allocation4], 1
    %s347 = scalar_lea.sflag [#allocation4], 1
    %348 = vsyncpa %s347, 1

</llo_original>
